<compile_context>
chip_gen: v6e
topology: v6e:2x2x1
jax: 0.10.0
libtpu: 0.0.40
codegen_flags: <defaults>
</compile_context>

<pallas_src>
import jax
import jax.numpy as jnp
from jax.experimental import pallas as pl
from jax.experimental.pallas import tpu as pltpu

_LN_EPS = 1e-5
_LANE = 128


def _round_up(x, m):
    return (x + m - 1) // m * m


# ----------------------------------------------------------------------------
# Fused kernel: (Linear -> LayerNorm -> ReLU) x L  ->  Linear (lane-padded out)
# ----------------------------------------------------------------------------

def _emotion_regression_kernel(x_ref, *refs):
    """refs layout: [w_0, pgb_0, w_1, pgb_1, ..., w_out_pad, b_out_pad, out_ref].

    pgb_l is a packed (3, head_dim) block: row 0 = linear bias, row 1 = LN gamma,
    row 2 = LN beta.  Weights may be bf16 (MXU operands); all LN/ReLU math is f32.
    """
    out_ref = refs[-1]
    p = refs[:-1]
    n_hidden = (len(p) - 2) // 2

    h = x_ref[...].astype(jnp.float32)
    # TODO(synk): nn.Dropout (inp_drop and the per-layer p=0.5 dropouts) is identity
    # here (eval mode); a training-mode forward would need pltpu.prng_seed /
    # pltpu.prng_random_bits masking.
    for l in range(n_hidden):
        w = p[2 * l][...]
        pgb = p[2 * l + 1][...]                      # (3, head_dim), f32
        b = pgb[0:1, :]
        g = pgb[1:2, :]
        beta = pgb[2:3, :]
        # Linear (MXU, f32 accumulation)
        h = jnp.dot(h.astype(w.dtype), w, preferred_element_type=jnp.float32) + b
        # LayerNorm (biased variance, eps=1e-5 — PyTorch defaults), f32 math
        mu = jnp.mean(h, axis=-1, keepdims=True)
        var = jnp.mean((h - mu) ** 2, axis=-1, keepdims=True)
        h = (h - mu) * jax.lax.rsqrt(var + _LN_EPS) * g + beta
        # ReLU
        h = jnp.maximum(h, 0.0)

    w_out = p[-2][...]                               # (head_dim, out_pad)  lane-dense
    b_out = p[-1][...]                               # (1, out_pad)         f32
    out_ref[...] = (
        jnp.dot(h.astype(w_out.dtype), w_out, preferred_element_type=jnp.float32)
        + b_out
    )


# ----------------------------------------------------------------------------
# Wrapper
# ----------------------------------------------------------------------------

def emotion_regression_forward(params, x, *, batch_tile=1024):
    """Fused forward.  Small batches -> single gridless call (everything in VMEM).
    Large batches -> 1-D batch grid, weights resident, parallel over TensorCores."""
    batch, in_dim = x.shape
    out_pad = params["out_w_pad"].shape[1]
    out_dim = params["output_dim"]

    args = []
    for (w, pgb) in params["layers"]:
        args += [w, pgb]
    args += [params["out_w_pad"], params["out_b_pad"]]
    n_refs = 1 + len(args)

    vmem = pltpu.MemorySpace.VMEM

    if batch <= batch_tile:
        # Gridless: one shot, no per-grid-step overhead (right choice at batch=16).
        out = pl.pallas_call(
            _emotion_regression_kernel,
            out_shape=jax.ShapeDtypeStruct((batch, out_pad), jnp.float32),
            in_specs=[pl.BlockSpec(memory_space=vmem)] * n_refs,
            out_specs=pl.BlockSpec(memory_space=vmem),
        )(x, *args)
        return out[:, :out_dim]

    # Batch-tiled grid: pad the batch to a tile multiple (padded rows are sliced
    # off afterwards), keep all parameters resident via constant index maps, and
    # mark the batch axis parallel (second TensorCore on v7x; harmless elsewhere).
    padded_batch = _round_up(batch, batch_tile)
    if padded_batch != batch:
        x = jnp.pad(x, ((0, padded_batch - batch), (0, 0)))

    in_specs = [pl.BlockSpec((batch_tile, in_dim), lambda i: (i, 0), memory_space=vmem)]
    for a in args:
        in_specs.append(pl.BlockSpec(a.shape, lambda i: (0, 0), memory_space=vmem))
    out_specs = pl.BlockSpec((batch_tile, out_pad), lambda i: (i, 0), memory_space=vmem)

    out = pl.pallas_call(
        _emotion_regression_kernel,
        grid=(padded_batch // batch_tile,),
        out_shape=jax.ShapeDtypeStruct((padded_batch, out_pad), jnp.float32),
        in_specs=in_specs,
        out_specs=out_specs,
        compiler_params=pltpu.CompilerParams(dimension_semantics=("parallel",)),
    )(x, *args)
    return out[:batch, :out_dim]


# ----------------------------------------------------------------------------
# Deterministic synthetic parameters (PyTorch-style uniform init), pre-packed
# ----------------------------------------------------------------------------

def init_params(key, dh_input_dim, head_dim, output_dim, num_layers,
                *, weights_dtype=jnp.float32):
    ks = jax.random.split(key, num_layers + 1)

    def lin(k, fan_in, fan_out):
        s = 1.0 / (fan_in ** 0.5)
        kw, kb = jax.random.split(k)
        w = jax.random.uniform(kw, (fan_in, fan_out), jnp.float32, -s, s)
        b = jax.random.uniform(kb, (fan_out,), jnp.float32, -s, s)
        return w, b

    layers = []
    d_in = dh_input_dim
    for l in range(num_layers):
        w, b = lin(ks[l], d_in, head_dim)
        # Pack (bias, LN gamma, LN beta) into one (3, head_dim) f32 block.
        pgb = jnp.stack(
            [b, jnp.ones((head_dim,), jnp.float32), jnp.zeros((head_dim,), jnp.float32)],
            axis=0)
        layers.append((w.astype(weights_dtype), pgb))
        d_in = head_dim

    w_out, b_out = lin(ks[-1], head_dim, output_dim)
    out_pad = _round_up(output_dim, _LANE)
    w_out_pad = (jnp.zeros((head_dim, out_pad), jnp.float32)
                 .at[:, :output_dim].set(w_out).astype(weights_dtype))
    b_out_pad = jnp.zeros((1, out_pad), jnp.float32).at[:, :output_dim].set(b_out)

    return {
        "layers": layers,
        "out_w_pad": w_out_pad,
        "out_b_pad": b_out_pad,
        "output_dim": output_dim,
    }


def reference_forward(params, x):
    """Pure-JAX (f32) reference of the same eval-mode forward."""
    h = x
    for (w, pgb) in params["layers"]:
        h = h @ w.astype(jnp.float32) + pgb[0]
        mu = jnp.mean(h, axis=-1, keepdims=True)
        var = jnp.mean((h - mu) ** 2, axis=-1, keepdims=True)
        h = (h - mu) * jax.lax.rsqrt(var + _LN_EPS) * pgb[1] + pgb[2]
        h = jnp.maximum(h, 0.0)
    out = h @ params["out_w_pad"].astype(jnp.float32) + params["out_b_pad"]
    return out[:, :params["output_dim"]]


if __name__ == "__main__":
    DH_INPUT_DIM = 32     # pooled embedding dim fed into the regression head
    HEAD_DIM = 128        # lane-dense hidden width (full 128-lane vregs)
    OUTPUT_DIM = 3        # e.g. arousal / dominance / valence
    NUM_LAYERS = 2
    BATCH = 16

    key = jax.random.PRNGKey(0)
    pkey, xkey = jax.random.split(key)

    # --- f32 params, small batch (gridless path) ---------------------------
    params = init_params(pkey, DH_INPUT_DIM, HEAD_DIM, OUTPUT_DIM, NUM_LAYERS)
    x = jax.random.normal(xkey, (BATCH, DH_INPUT_DIM), dtype=jnp.float32)

    out = jax.block_until_ready(emotion_regression_forward(params, x))
    assert out.shape == (BATCH, OUTPUT_DIM), out.shape
    assert out.dtype == jnp.float32
    ref = jax.block_until_ready(reference_forward(params, x))
    assert jnp.allclose(out, ref, atol=1e-4, rtol=1e-4), "f32 gridless mismatch"

    # --- larger batch exercises the batch-tiled, parallel-grid path --------
    BIG_BATCH = 1000      # deliberately not a tile multiple -> exercises padding
    xb = jax.random.normal(jax.random.PRNGKey(1), (BIG_BATCH, DH_INPUT_DIM),
                           dtype=jnp.float32)
    out_b = jax.block_until_ready(
        emotion_regression_forward(params, xb, batch_tile=256))
    ref_b = jax.block_until_ready(reference_forward(params, xb))
    assert out_b.shape == (BIG_BATCH, OUTPUT_DIM), out_b.shape
    assert jnp.allclose(out_b, ref_b, atol=1e-4, rtol=1e-4), "gridded mismatch"

    # --- bf16-weight variant (MXU-only bf16; LN/ReLU stay f32) -------------
    params_bf16 = init_params(pkey, DH_INPUT_DIM, HEAD_DIM, OUTPUT_DIM, NUM_LAYERS,
                              weights_dtype=jnp.bfloat16)
    out16 = jax.block_until_ready(emotion_regression_forward(params_bf16, x))
    ref16 = jax.block_until_ready(reference_forward(params_bf16, x))
    assert jnp.allclose(out16, ref16, atol=5e-2, rtol=5e-2), "bf16 mismatch"

    print("KERNEL_OK")
</pallas_src>

<mosaic_0001>
module attributes {stable_mosaic.version = 11 : i64} {
  func.func @_emotion_regression_kernel(%arg0: memref<16x32xf32, #tpu.memory_space<vmem>>, %arg1: memref<32x128xf32, #tpu.memory_space<vmem>>, %arg2: memref<3x128xf32, #tpu.memory_space<vmem>>, %arg3: memref<128x128xf32, #tpu.memory_space<vmem>>, %arg4: memref<3x128xf32, #tpu.memory_space<vmem>>, %arg5: memref<128x128xf32, #tpu.memory_space<vmem>>, %arg6: memref<1x128xf32, #tpu.memory_space<vmem>>, %arg7: memref<16x128xf32, #tpu.memory_space<vmem>>) attributes {dimension_semantics = [], scalar_prefetch = 0 : i64, scratch_operands = 0 : i64, tpu.core_type = #tpu.core_type<tc>} {
    %c0 = arith.constant 0 : index
    %c0_0 = arith.constant 0 : index
    %0 = vector.load %arg0[%c0, %c0_0] : memref<16x32xf32, #tpu.memory_space<vmem>>, vector<16x32xf32>
    %c0_1 = arith.constant 0 : index
    %c0_2 = arith.constant 0 : index
    %1 = vector.load %arg1[%c0_1, %c0_2] : memref<32x128xf32, #tpu.memory_space<vmem>>, vector<32x128xf32>
    %c0_3 = arith.constant 0 : index
    %c0_4 = arith.constant 0 : index
    %2 = vector.load %arg2[%c0_3, %c0_4] : memref<3x128xf32, #tpu.memory_space<vmem>>, vector<3x128xf32>
    %3 = vector.extract_strided_slice %2 {offsets = [0, 0], sizes = [1, 128], strides = [1, 1]} : vector<3x128xf32> to vector<1x128xf32>
    %4 = vector.extract_strided_slice %2 {offsets = [1, 0], sizes = [1, 128], strides = [1, 1]} : vector<3x128xf32> to vector<1x128xf32>
    %5 = vector.extract_strided_slice %2 {offsets = [2, 0], sizes = [1, 128], strides = [1, 1]} : vector<3x128xf32> to vector<1x128xf32>
    %cst = arith.constant dense<0.000000e+00> : vector<16x128xf32>
    %6 = tpu.matmul %0, %1, %cst {dimension_numbers = #tpu.dot_dimension_numbers<[1], [0], [0], [1], [0, 0, 1, 1], [], []>} : vector<16x32xf32>, vector<32x128xf32>, vector<16x128xf32> -> vector<16x128xf32>
    %7 = vector.broadcast %3 : vector<1x128xf32> to vector<16x128xf32>
    %8 = arith.addf %6, %7 : vector<16x128xf32>
    %cst_5 = arith.constant dense<0.000000e+00> : vector<16xf32>
    %9 = vector.multi_reduction <add>, %8, %cst_5 [1] : vector<16x128xf32> to vector<16xf32>
    %10 = vector.shape_cast %9 : vector<16xf32> to vector<16x1xf32>
    %cst_6 = arith.constant 1.280000e+02 : f32
    %11 = vector.broadcast %cst_6 : f32 to vector<16x1xf32>
    %12 = arith.divf %10, %11 : vector<16x1xf32>
    %13 = vector.broadcast %12 : vector<16x1xf32> to vector<16x128xf32>
    %14 = arith.subf %8, %13 : vector<16x128xf32>
    %15 = arith.mulf %14, %14 : vector<16x128xf32>
    %cst_7 = arith.constant dense<0.000000e+00> : vector<16xf32>
    %16 = vector.multi_reduction <add>, %15, %cst_7 [1] : vector<16x128xf32> to vector<16xf32>
    %17 = vector.shape_cast %16 : vector<16xf32> to vector<16x1xf32>
    %cst_8 = arith.constant 1.280000e+02 : f32
    %18 = vector.broadcast %cst_8 : f32 to vector<16x1xf32>
    %19 = arith.divf %17, %18 : vector<16x1xf32>
    %20 = vector.broadcast %12 : vector<16x1xf32> to vector<16x128xf32>
    %21 = arith.subf %8, %20 : vector<16x128xf32>
    %cst_9 = arith.constant 9.99999974E-6 : f32
    %22 = vector.broadcast %cst_9 : f32 to vector<16x1xf32>
    %23 = arith.addf %19, %22 : vector<16x1xf32>
    %24 = math.rsqrt %23 : vector<16x1xf32>
    %25 = vector.broadcast %24 : vector<16x1xf32> to vector<16x128xf32>
    %26 = arith.mulf %21, %25 : vector<16x128xf32>
    %27 = vector.broadcast %4 : vector<1x128xf32> to vector<16x128xf32>
    %28 = arith.mulf %26, %27 : vector<16x128xf32>
    %29 = vector.broadcast %5 : vector<1x128xf32> to vector<16x128xf32>
    %30 = arith.addf %28, %29 : vector<16x128xf32>
    %cst_10 = arith.constant 0.000000e+00 : f32
    %31 = vector.broadcast %cst_10 : f32 to vector<16x128xf32>
    %32 = arith.maximumf %30, %31 : vector<16x128xf32>
    %c0_11 = arith.constant 0 : index
    %c0_12 = arith.constant 0 : index
    %33 = vector.load %arg3[%c0_11, %c0_12] : memref<128x128xf32, #tpu.memory_space<vmem>>, vector<128x128xf32>
    %c0_13 = arith.constant 0 : index
    %c0_14 = arith.constant 0 : index
    %34 = vector.load %arg4[%c0_13, %c0_14] : memref<3x128xf32, #tpu.memory_space<vmem>>, vector<3x128xf32>
    %35 = vector.extract_strided_slice %34 {offsets = [0, 0], sizes = [1, 128], strides = [1, 1]} : vector<3x128xf32> to vector<1x128xf32>
    %36 = vector.extract_strided_slice %34 {offsets = [1, 0], sizes = [1, 128], strides = [1, 1]} : vector<3x128xf32> to vector<1x128xf32>
    %37 = vector.extract_strided_slice %34 {offsets = [2, 0], sizes = [1, 128], strides = [1, 1]} : vector<3x128xf32> to vector<1x128xf32>
    %cst_15 = arith.constant dense<0.000000e+00> : vector<16x128xf32>
    %38 = tpu.matmul %32, %33, %cst_15 {dimension_numbers = #tpu.dot_dimension_numbers<[1], [0], [0], [1], [0, 0, 1, 1], [], []>} : vector<16x128xf32>, vector<128x128xf32>, vector<16x128xf32> -> vector<16x128xf32>
    %39 = vector.broadcast %35 : vector<1x128xf32> to vector<16x128xf32>
    %40 = arith.addf %38, %39 : vector<16x128xf32>
    %cst_16 = arith.constant dense<0.000000e+00> : vector<16xf32>
    %41 = vector.multi_reduction <add>, %40, %cst_16 [1] : vector<16x128xf32> to vector<16xf32>
    %42 = vector.shape_cast %41 : vector<16xf32> to vector<16x1xf32>
    %cst_17 = arith.constant 1.280000e+02 : f32
    %43 = vector.broadcast %cst_17 : f32 to vector<16x1xf32>
    %44 = arith.divf %42, %43 : vector<16x1xf32>
    %45 = vector.broadcast %44 : vector<16x1xf32> to vector<16x128xf32>
    %46 = arith.subf %40, %45 : vector<16x128xf32>
    %47 = arith.mulf %46, %46 : vector<16x128xf32>
    %cst_18 = arith.constant dense<0.000000e+00> : vector<16xf32>
    %48 = vector.multi_reduction <add>, %47, %cst_18 [1] : vector<16x128xf32> to vector<16xf32>
    %49 = vector.shape_cast %48 : vector<16xf32> to vector<16x1xf32>
    %cst_19 = arith.constant 1.280000e+02 : f32
    %50 = vector.broadcast %cst_19 : f32 to vector<16x1xf32>
    %51 = arith.divf %49, %50 : vector<16x1xf32>
    %52 = vector.broadcast %44 : vector<16x1xf32> to vector<16x128xf32>
    %53 = arith.subf %40, %52 : vector<16x128xf32>
    %cst_20 = arith.constant 9.99999974E-6 : f32
    %54 = vector.broadcast %cst_20 : f32 to vector<16x1xf32>
    %55 = arith.addf %51, %54 : vector<16x1xf32>
    %56 = math.rsqrt %55 : vector<16x1xf32>
    %57 = vector.broadcast %56 : vector<16x1xf32> to vector<16x128xf32>
    %58 = arith.mulf %53, %57 : vector<16x128xf32>
    %59 = vector.broadcast %36 : vector<1x128xf32> to vector<16x128xf32>
    %60 = arith.mulf %58, %59 : vector<16x128xf32>
    %61 = vector.broadcast %37 : vector<1x128xf32> to vector<16x128xf32>
    %62 = arith.addf %60, %61 : vector<16x128xf32>
    %cst_21 = arith.constant 0.000000e+00 : f32
    %63 = vector.broadcast %cst_21 : f32 to vector<16x128xf32>
    %64 = arith.maximumf %62, %63 : vector<16x128xf32>
    %c0_22 = arith.constant 0 : index
    %c0_23 = arith.constant 0 : index
    %65 = vector.load %arg5[%c0_22, %c0_23] : memref<128x128xf32, #tpu.memory_space<vmem>>, vector<128x128xf32>
    %c0_24 = arith.constant 0 : index
    %c0_25 = arith.constant 0 : index
    %66 = vector.load %arg6[%c0_24, %c0_25] : memref<1x128xf32, #tpu.memory_space<vmem>>, vector<1x128xf32>
    %cst_26 = arith.constant dense<0.000000e+00> : vector<16x128xf32>
    %67 = tpu.matmul %64, %65, %cst_26 {dimension_numbers = #tpu.dot_dimension_numbers<[1], [0], [0], [1], [0, 0, 1, 1], [], []>} : vector<16x128xf32>, vector<128x128xf32>, vector<16x128xf32> -> vector<16x128xf32>
    %68 = vector.broadcast %66 : vector<1x128xf32> to vector<16x128xf32>
    %69 = arith.addf %67, %68 : vector<16x128xf32>
    %c0_27 = arith.constant 0 : index
    %c0_28 = arith.constant 0 : index
    %70 = vector.load %arg7[%c0_27, %c0_28] : memref<16x128xf32, #tpu.memory_space<vmem>>, vector<16x128xf32>
    tpu.vector_store %arg7[%c0_27, %c0_28], %69 {strides = array<i32>} : memref<16x128xf32, #tpu.memory_space<vmem>>, vector<16x128xf32>,
    return
  }
}

</mosaic_0001>

<llo_original>
// kernel: tpu_custom_call.1
$region0: #{tpu_custom_call.1}
  #allocation0 [shape = 'u32[]', space=smem, size = 0x4, offset = 0x4, fixed_abs, tag = 'smem constant byte address 0x4 - core index']
  #allocation1 [shape = 'u32[144,128]{1,0:T(1,128)}', space=vmem, size = 0x12000, scoped, tag = 'internal scratch']
  %s0 = inlined_call_operand.hbm [shape: f32[16,32], index: 0, kind: input, shape index: {}]
  %s1 = inlined_call_operand.hbm [shape: f32[32,128], index: 1, kind: input, shape index: {}]
  %s2 = inlined_call_operand.hbm [shape: f32[3,128], index: 2, kind: input, shape index: {}]
  %s3 = inlined_call_operand.hbm [shape: f32[128,128], index: 3, kind: input, shape index: {}]
  %s4 = inlined_call_operand.vmem [shape: f32[3,128], index: 4, kind: input, shape index: {}]
  %s5 = inlined_call_operand.hbm [shape: f32[128,128], index: 5, kind: input, shape index: {}]
  %s6 = inlined_call_operand.vmem [shape: f32[1,128], index: 6, kind: input, shape index: {}]
  %s7 = inlined_call_operand.hbm [shape: f32[16,128], index: 7, kind: output, shape index: {}]
  %s8 = sld [smem:[#allocation0]]
  $region58: #{tpu_custom_call.1} parent=0
    _
  %s10 = ssub.s32 1, %s8
  %s11 = scalar_select 0, %s10, %s8
  $region1: #{tpu_custom_call.1} parent=0
    #allocation2 [shape = 'u8[8192]{0}', space=vmem, size = 0x2000, scoped, tag = 'input window, operand 0, single buffered']
    #allocation3 [shape = 's32[1]{0}', space=sflag, size = 0x4, scoped, tag = 'scoped memory for tpu_custom_call.1']
    #allocation4 [shape = 's32[1]{0}', space=sflag, size = 0x4, scoped, tag = 'scoped memory for tpu_custom_call.1']
    #allocation5 [shape = 'u8[16384]{0}', space=vmem, size = 0x4000, scoped, tag = 'input window, operand 1, single buffered']
    #allocation6 [shape = 's32[1]{0}', space=sflag, size = 0x4, scoped, tag = 'scoped memory for tpu_custom_call.1']
    #allocation7 [shape = 'u8[2048]{0}', space=vmem, size = 0x800, scoped, tag = 'input window, operand 2, single buffered']
    #allocation8 [shape = 'u8[65536]{0}', space=vmem, size = 0x10000, scoped, tag = 'input window, operand 3, single buffered']
    #allocation9 [shape = 's32[1]{0}', space=sflag, size = 0x4, scoped, tag = 'scoped memory for tpu_custom_call.1']
    #allocation10 [shape = 'u8[65536]{0}', space=vmem, size = 0x10000, scoped, tag = 'input window, operand 5, single buffered']
    #allocation11 [shape = 'u8[8192]{0}', space=vmem, size = 0x2000, scoped, tag = 'output window, operand 0, single buffered']
    %12 = vsyncpa [#allocation3], 0
    %13 = vsyncpa [#allocation6], 0
    %14 = vsyncpa [#allocation9], 0
    %15 = vsyncpa [#allocation4], 0
    // Predicated region
    $region2: #{tpu_custom_call.1} parent=1 // pred_check
      _
    $region3: #{tpu_custom_call.1} parent=1 // pred_check_branch
      %17 = sbr.rel (0) target = $region5
    $region4: #{tpu_custom_call.1} parent=1 // pred_region
      %s19 = ssub.s32 256, 256
      %20 = vsyncadd [#allocation3], %s19
      %s21 = sshll.u32 [#allocation2], 4
      %s22 = int_to_ptr.vmem [resolvable:$true] %s21
      %27 = dma.hbm_to_vmem [thread:$0]  %s0, 256, %s22, [#allocation3], 128, 128, 8
    $region5: #{tpu_custom_call.1} parent=1 // pred_fallthru
      _
    // Predicated region
    $region6: #{tpu_custom_call.1} parent=1 // pred_check
      _
    $region7: #{tpu_custom_call.1} parent=1 // pred_check_branch
      %29 = sbr.rel (0) target = $region9
    $region8: #{tpu_custom_call.1} parent=1 // pred_region
      %s31 = ssub.s32 512, 512
      %32 = vsyncadd [#allocation6], %s31
      %s33 = sshll.u32 [#allocation5], 4
      %s34 = int_to_ptr.vmem [resolvable:$true] %s33
      %39 = dma.hbm_to_vmem [thread:$0]  %s1, 512, %s34, [#allocation6], 128, 128, 8
    $region9: #{tpu_custom_call.1} parent=1 // pred_fallthru
      _
    // Predicated region
    $region10: #{tpu_custom_call.1} parent=1 // pred_check
      _
    $region11: #{tpu_custom_call.1} parent=1 // pred_check_branch
      %41 = sbr.rel (0) target = $region13
    $region12: #{tpu_custom_call.1} parent=1 // pred_region
      %s43 = ssub.s32 64, 64
      %44 = vsyncadd [#allocation6], %s43
      %s46 = sshll.u32 [#allocation7], 4
      %s47 = int_to_ptr.vmem [resolvable:$true] %s46
      %49 = dma.hbm_to_vmem [thread:$0]  %s2, 64, %s47, [#allocation6]
    $region13: #{tpu_custom_call.1} parent=1 // pred_fallthru
      _
    // Predicated region
    $region14: #{tpu_custom_call.1} parent=1 // pred_check
      _
    $region15: #{tpu_custom_call.1} parent=1 // pred_check_branch
      %51 = sbr.rel (0) target = $region17
    $region16: #{tpu_custom_call.1} parent=1 // pred_region
      %s53 = ssub.s32 2048, 2048
      %54 = vsyncadd [#allocation9], %s53
      %s55 = sshll.u32 [#allocation8], 4
      %s56 = int_to_ptr.vmem [resolvable:$true] %s55
      %61 = dma.hbm_to_vmem [thread:$0]  %s3, 2048, %s56, [#allocation9], 128, 128, 8
    $region17: #{tpu_custom_call.1} parent=1 // pred_fallthru
      _
    // Predicated region
    $region18: #{tpu_custom_call.1} parent=1 // pred_check
      _
    $region19: #{tpu_custom_call.1} parent=1 // pred_check_branch
      %63 = sbr.rel (0) target = $region21
    $region20: #{tpu_custom_call.1} parent=1 // pred_region
      _
    $region21: #{tpu_custom_call.1} parent=1 // pred_fallthru
      _
    // Predicated region
    $region22: #{tpu_custom_call.1} parent=1 // pred_check
      _
    $region23: #{tpu_custom_call.1} parent=1 // pred_check_branch
      %65 = sbr.rel (0) target = $region25
    $region24: #{tpu_custom_call.1} parent=1 // pred_region
      %s67 = ssub.s32 2048, 2048
      %68 = vsyncadd [#allocation9], %s67
      %s69 = sshll.u32 [#allocation10], 4
      %s70 = int_to_ptr.vmem [resolvable:$true] %s69
      %75 = dma.hbm_to_vmem [thread:$0]  %s5, 2048, %s70, [#allocation9], 128, 128, 8
    $region25: #{tpu_custom_call.1} parent=1 // pred_fallthru
      _
    // Predicated region
    $region26: #{tpu_custom_call.1} parent=1 // pred_check
      _
    $region27: #{tpu_custom_call.1} parent=1 // pred_check_branch
      %77 = sbr.rel (0) target = $region29
    $region28: #{tpu_custom_call.1} parent=1 // pred_region
      _
    $region29: #{tpu_custom_call.1} parent=1 // pred_fallthru
      _
    // Predicated region
    $region30: #{tpu_custom_call.1} parent=1 // pred_check
      _
    $region31: #{tpu_custom_call.1} parent=1 // pred_check_branch
      %79 = sbr.rel (0) target = $region33
    $region32: #{tpu_custom_call.1} parent=1 // pred_region
      %80 = dma.done [#allocation3], 256
    $region33: #{tpu_custom_call.1} parent=1 // pred_fallthru
      _
    // Predicated region
    $region34: #{tpu_custom_call.1} parent=1 // pred_check
      _
    $region35: #{tpu_custom_call.1} parent=1 // pred_check_branch
      %82 = sbr.rel (0) target = $region37
    $region36: #{tpu_custom_call.1} parent=1 // pred_region
      %83 = dma.done [#allocation6], 512
    $region37: #{tpu_custom_call.1} parent=1 // pred_fallthru
      _
    // Predicated region
    $region38: #{tpu_custom_call.1} parent=1 // pred_check
      _
    $region39: #{tpu_custom_call.1} parent=1 // pred_check_branch
      %85 = sbr.rel (0) target = $region41
    $region40: #{tpu_custom_call.1} parent=1 // pred_region
      %86 = dma.done [#allocation6], 64
    $region41: #{tpu_custom_call.1} parent=1 // pred_fallthru
      _
    // Predicated region
    $region42: #{tpu_custom_call.1} parent=1 // pred_check
      _
    $region43: #{tpu_custom_call.1} parent=1 // pred_check_branch
      %88 = sbr.rel (0) target = $region45
    $region44: #{tpu_custom_call.1} parent=1 // pred_region
      %89 = dma.done [#allocation9], 2048
    $region45: #{tpu_custom_call.1} parent=1 // pred_fallthru
      _
    // Predicated region
    $region46: #{tpu_custom_call.1} parent=1 // pred_check
      _
    $region47: #{tpu_custom_call.1} parent=1 // pred_check_branch
      %91 = sbr.rel (0) target = $region49
    $region48: #{tpu_custom_call.1} parent=1 // pred_region
      %92 = dma.done [#allocation9], 2048
    $region49: #{tpu_custom_call.1} parent=1 // pred_fallthru
      _
    %v93 = vld [vmem:[#allocation2] sm:$0xff]
    %v94 = vld [vmem:[#allocation2 + $0x8] sm:$0xff]
    %v95 = vld [vmem:[#allocation5] sm:$0xff]
    %v96 = vld [vmem:[#allocation5 + $0x8] sm:$0xff]
    %v97 = vld [vmem:[#allocation5 + $0x10] sm:$0xff]
    %v98 = vld [vmem:[#allocation5 + $0x18] sm:$0xff]
    %v99 = vld [vmem:[#allocation7] sm:$0x7]
    %v100 = vlaneseq
    %v101 = vshrl.u32 %v100, 7
    %v102 = vsub.s32 0, %v101
    %v103 = vrot.slane %v99, %v102
    %vm104 = vcmask 261120
    %v106 = vsel %vm104, %v93, 0
    %v109 = vsel %vm104, %v94, 0
    %111 = vmatprep.subr.mxu0 0.0
    %112 = vmatpush1.msra.mxu0 0.0
    %113 = vmatprep.subr.mxu0 0.0
    %114 = vmatpush1.msra.mxu0 0.0
    %115 = vmatprep.subr.mxu0 0.0
    %116 = vmatpush1.msra.mxu0 0.0
    %117 = vmatprep.subr.mxu0 0.0
    %118 = vmatpush1.msra.mxu0 0.0
    %119 = vmatprep.subr.mxu0 0.0
    %120 = vmatpush1.msra.mxu0 0.0
    %121 = vmatprep.subr.mxu0 0.0
    %122 = vmatpush1.msra.mxu0 0.0
    %123 = vmatprep.subr.mxu0 0.0
    %124 = vmatpush1.msra.mxu0 0.0
    %125 = vmatprep.subr.mxu0 0.0
    %126 = vmatpush1.msra.mxu0 0.0
    %127 = vmatprep.subr.mxu0 0.0
    %128 = vmatpush1.msra.mxu0 0.0
    %129 = vmatprep.subr.mxu0 0.0
    %130 = vmatpush1.msra.mxu0 0.0
    %131 = vmatprep.subr.mxu0 0.0
    %132 = vmatpush1.msra.mxu0 0.0
    %133 = vmatprep.subr.mxu0 0.0
    %134 = vmatpush1.msra.mxu0 0.0
    %135 = vmatprep.subr.mxu0 0.0
    %136 = vmatpush1.msra.mxu0 %v98
    %137 = vmatprep.subr.mxu0 0.0
    %138 = vmatpush1.msra.mxu0 %v97
    %139 = vmatprep.subr.mxu0 0.0
    %140 = vmatpush1.msra.mxu0 %v96
    %141 = vmatprep.subr.mxu0 0.0
    %142 = vmatpush1.msra.mxu0 %v95
    %143 = vmatprep.subr.mxu0 0.0
    %144 = vmatpush2.msra.mxu0 0.0
    %145 = vmatprep.subr.mxu0 0.0
    %146 = vmatpush2.msra.mxu0 0.0
    %147 = vmatprep.subr.mxu0 0.0
    %148 = vmatpush2.msra.mxu0 0.0
    %149 = vmatprep.subr.mxu0 0.0
    %150 = vmatpush2.msra.mxu0 0.0
    %151 = vmatprep.subr.mxu0 0.0
    %152 = vmatpush2.msra.mxu0 0.0
    %153 = vmatprep.subr.mxu0 0.0
    %154 = vmatpush2.msra.mxu0 0.0
    %155 = vmatprep.subr.mxu0 0.0
    %156 = vmatpush2.msra.mxu0 0.0
    %157 = vmatprep.subr.mxu0 0.0
    %158 = vmatpush2.msra.mxu0 0.0
    %159 = vmatprep.subr.mxu0 0.0
    %160 = vmatpush2.msra.mxu0 0.0
    %161 = vmatprep.subr.mxu0 0.0
    %162 = vmatpush2.msra.mxu0 0.0
    %163 = vmatprep.subr.mxu0 0.0
    %164 = vmatpush2.msra.mxu0 0.0
    %165 = vmatprep.subr.mxu0 0.0
    %166 = vmatpush2.msra.mxu0 0.0
    %167 = vmatprep.subr.mxu0 0.0
    %168 = vmatpush2.msra.mxu0 0.0
    %169 = vmatprep.subr.mxu0 0.0
    %170 = vmatpush2.msra.mxu0 0.0
    %171 = vmatprep.subr.mxu0 0.0
    %172 = vmatpush2.msra.mxu0 0.0
    %173 = vmatprep.subr.mxu0 0.0
    %174 = vmatpush2.msra.mxu0 0.0
    %175 = vmatprep.mubr.f32.mxu0 0.0
    %176 = vmatmul.mubr.f32.gmra.mxu0 %v106
    %v177 = vpop.f32.mrf.mxu0
    %v178 = vadd.f32 %v103, %v177
    %v179 = vpop.f32.mrf.mxu0
    %180 = vmatprep.mubr.f32.mxu0 0.0
    %181 = vmatmul.mubr.f32.gmra.mxu0 %v109
    %v182 = vpop.f32.mrf.mxu0
    %v183 = vadd.f32 %v103, %v182
    %v184 = vpop.f32.mrf.mxu0
    %185 = vdwg.mxu0
    %186 = vadd.xlane.f32.xlu0 %v178
    %v187 = vpop.xlane.xlu0 %186
    %188 = vadd.xlane.f32.xlu0 %v183
    %v189 = vpop.xlane.xlu0 %188
    %v190 = vrcp.pop 128.0
    %v191 = vmul.f32 %v187, %v190
    %v192 = vmul.f32 %v189, %v190
    %v193 = vsub.f32 %v178, %v191
    %v194 = vsub.f32 %v183, %v192
    %v195 = vmul.f32 %v193, %v193
    %v196 = vmul.f32 %v194, %v194
    %197 = vadd.xlane.f32.xlu0 %v195
    %v198 = vpop.xlane.xlu0 %197
    %199 = vadd.xlane.f32.xlu0 %v196
    %v200 = vpop.xlane.xlu0 %199
    %v201 = vmul.f32 %v198, %v190
    %v202 = vmul.f32 %v200, %v190
    %v203 = vadd.f32 %v201, 1e-05
    %v204 = vadd.f32 %v202, 1e-05
    %v205 = vrsqrt.pop %v203
    %v206 = vrsqrt.pop %v204
    %v207 = vmul.f32 %v193, %v205
    %v208 = vmul.f32 %v194, %v206
    %v209 = vlaneseq
    %v210 = vshrl.u32 %v209, 7
    %v211 = vsub.s32 1, %v210
    %v212 = vrot.slane %v99, %v211
    %v213 = vmul.f32 %v207, %v212
    %v214 = vmul.f32 %v208, %v212
    %v215 = vlaneseq
    %v216 = vshrl.u32 %v215, 7
    %v217 = vsub.s32 2, %v216
    %v218 = vrot.slane %v99, %v217
    %v219 = vadd.f32 %v213, %v218
    %v220 = vadd.f32 %v214, %v218
    %v221 = vmax.f32 %v219, 0.0
    %v222 = vmax.f32 %v220, 0.0
    %v223 = vld [vmem:[#allocation8] sm:$0xff]
    %v224 = vld [vmem:[#allocation8 + $0x8] sm:$0xff]
    %v225 = vld [vmem:[#allocation8 + $0x10] sm:$0xff]
    %v226 = vld [vmem:[#allocation8 + $0x18] sm:$0xff]
    %v227 = vld [vmem:[#allocation8 + $0x20] sm:$0xff]
    %v228 = vld [vmem:[#allocation8 + $0x28] sm:$0xff]
    %v229 = vld [vmem:[#allocation8 + $0x30] sm:$0xff]
    %v230 = vld [vmem:[#allocation8 + $0x38] sm:$0xff]
    %v231 = vld [vmem:[#allocation8 + $0x40] sm:$0xff]
    %v232 = vld [vmem:[#allocation8 + $0x48] sm:$0xff]
    %v233 = vld [vmem:[#allocation8 + $0x50] sm:$0xff]
    %v234 = vld [vmem:[#allocation8 + $0x58] sm:$0xff]
    %v235 = vld [vmem:[#allocation8 + $0x60] sm:$0xff]
    %v236 = vld [vmem:[#allocation8 + $0x68] sm:$0xff]
    %v237 = vld [vmem:[#allocation8 + $0x70] sm:$0xff]
    %v238 = vld [vmem:[#allocation8 + $0x78] sm:$0xff]
    %v239 = vld [vmem:[%s4] sm:$0x7]
    %v240 = vlaneseq
    %v241 = vshrl.u32 %v240, 7
    %v242 = vsub.s32 0, %v241
    %v243 = vrot.slane %v239, %v242
    %244 = vmatprep.subr.mxu0 0.0
    %245 = vmatpush1.msra.mxu0 %v238
    %246 = vmatprep.subr.mxu0 0.0
    %247 = vmatpush1.msra.mxu0 %v237
    %248 = vmatprep.subr.mxu0 0.0
    %249 = vmatpush1.msra.mxu0 %v236
    %250 = vmatprep.subr.mxu0 0.0
    %251 = vmatpush1.msra.mxu0 %v235
    %252 = vmatprep.subr.mxu0 0.0
    %253 = vmatpush1.msra.mxu0 %v234
    %254 = vmatprep.subr.mxu0 0.0
    %255 = vmatpush1.msra.mxu0 %v233
    %256 = vmatprep.subr.mxu0 0.0
    %257 = vmatpush1.msra.mxu0 %v232
    %258 = vmatprep.subr.mxu0 0.0
    %259 = vmatpush1.msra.mxu0 %v231
    %260 = vmatprep.subr.mxu0 0.0
    %261 = vmatpush1.msra.mxu0 %v230
    %262 = vmatprep.subr.mxu0 0.0
    %263 = vmatpush1.msra.mxu0 %v229
    %264 = vmatprep.subr.mxu0 0.0
    %265 = vmatpush1.msra.mxu0 %v228
    %266 = vmatprep.subr.mxu0 0.0
    %267 = vmatpush1.msra.mxu0 %v227
    %268 = vmatprep.subr.mxu0 0.0
    %269 = vmatpush1.msra.mxu0 %v226
    %270 = vmatprep.subr.mxu0 0.0
    %271 = vmatpush1.msra.mxu0 %v225
    %272 = vmatprep.subr.mxu0 0.0
    %273 = vmatpush1.msra.mxu0 %v224
    %274 = vmatprep.subr.mxu0 0.0
    %275 = vmatpush1.msra.mxu0 %v223
    %276 = vmatprep.subr.mxu0 0.0
    %277 = vmatpush2.msra.mxu0 0.0
    %278 = vmatprep.subr.mxu0 0.0
    %279 = vmatpush2.msra.mxu0 0.0
    %280 = vmatprep.subr.mxu0 0.0
    %281 = vmatpush2.msra.mxu0 0.0
    %282 = vmatprep.subr.mxu0 0.0
    %283 = vmatpush2.msra.mxu0 0.0
    %284 = vmatprep.subr.mxu0 0.0
    %285 = vmatpush2.msra.mxu0 0.0
    %286 = vmatprep.subr.mxu0 0.0
    %287 = vmatpush2.msra.mxu0 0.0
    %288 = vmatprep.subr.mxu0 0.0
    %289 = vmatpush2.msra.mxu0 0.0
    %290 = vmatprep.subr.mxu0 0.0
    %291 = vmatpush2.msra.mxu0 0.0
    %292 = vmatprep.subr.mxu0 0.0
    %293 = vmatpush2.msra.mxu0 0.0
    %294 = vmatprep.subr.mxu0 0.0
    %295 = vmatpush2.msra.mxu0 0.0
    %296 = vmatprep.subr.mxu0 0.0
    %297 = vmatpush2.msra.mxu0 0.0
    %298 = vmatprep.subr.mxu0 0.0
    %299 = vmatpush2.msra.mxu0 0.0
    %300 = vmatprep.subr.mxu0 0.0
    %301 = vmatpush2.msra.mxu0 0.0
    %302 = vmatprep.subr.mxu0 0.0
    %303 = vmatpush2.msra.mxu0 0.0
    %304 = vmatprep.subr.mxu0 0.0
    %305 = vmatpush2.msra.mxu0 0.0
    %306 = vmatprep.subr.mxu0 0.0
    %307 = vmatpush2.msra.mxu0 0.0
    %308 = vmatprep.mubr.f32.mxu0 0.0
    %309 = vmatmul.mubr.f32.gmra.mxu0 %v221
    %v310 = vpop.f32.mrf.mxu0
    %v311 = vadd.f32 %v243, %v310
    %v312 = vpop.f32.mrf.mxu0
    %313 = vmatprep.mubr.f32.mxu0 0.0
    %314 = vmatmul.mubr.f32.gmra.mxu0 %v222
    %v315 = vpop.f32.mrf.mxu0
    %v316 = vadd.f32 %v243, %v315
    %v317 = vpop.f32.mrf.mxu0
    %318 = vdwg.mxu0
    %319 = vadd.xlane.f32.xlu0 %v311
    %v320 = vpop.xlane.xlu0 %319
    %321 = vadd.xlane.f32.xlu0 %v316
    %v322 = vpop.xlane.xlu0 %321
    %v323 = vmul.f32 %v320, %v190
    %v324 = vmul.f32 %v322, %v190
    %v325 = vsub.f32 %v311, %v323
    %v326 = vsub.f32 %v316, %v324
    %v327 = vmul.f32 %v325, %v325
    %v328 = vmul.f32 %v326, %v326
    %329 = vadd.xlane.f32.xlu0 %v327
    %v330 = vpop.xlane.xlu0 %329
    %331 = vadd.xlane.f32.xlu0 %v328
    %v332 = vpop.xlane.xlu0 %331
    %v333 = vmul.f32 %v330, %v190
    %v334 = vmul.f32 %v332, %v190
    %v335 = vadd.f32 %v333, 1e-05
    %v336 = vadd.f32 %v334, 1e-05
    %v337 = vrsqrt.pop %v335
    %v338 = vrsqrt.pop %v336
    %v339 = vmul.f32 %v325, %v337
    %v340 = vmul.f32 %v326, %v338
    %v341 = vlaneseq
    %v342 = vshrl.u32 %v341, 7
    %v343 = vsub.s32 1, %v342
    %v344 = vrot.slane %v239, %v343
    %v345 = vmul.f32 %v339, %v344
    %v346 = vmul.f32 %v340, %v344
    %v347 = vlaneseq
    %v348 = vshrl.u32 %v347, 7
    %v349 = vsub.s32 2, %v348
    %v350 = vrot.slane %v239, %v349
    %v351 = vadd.f32 %v345, %v350
    %v352 = vadd.f32 %v346, %v350
    %v353 = vmax.f32 %v351, 0.0
    %v354 = vmax.f32 %v352, 0.0
    %v355 = vld [vmem:[#allocation10] sm:$0xff]
    %v356 = vld [vmem:[#allocation10 + $0x8] sm:$0xff]
    %v357 = vld [vmem:[#allocation10 + $0x10] sm:$0xff]
    %v358 = vld [vmem:[#allocation10 + $0x18] sm:$0xff]
    %v359 = vld [vmem:[#allocation10 + $0x20] sm:$0xff]
    %v360 = vld [vmem:[#allocation10 + $0x28] sm:$0xff]
    %v361 = vld [vmem:[#allocation10 + $0x30] sm:$0xff]
    %v362 = vld [vmem:[#allocation10 + $0x38] sm:$0xff]
    %v363 = vld [vmem:[#allocation10 + $0x40] sm:$0xff]
    %v364 = vld [vmem:[#allocation10 + $0x48] sm:$0xff]
    %v365 = vld [vmem:[#allocation10 + $0x50] sm:$0xff]
    %v366 = vld [vmem:[#allocation10 + $0x58] sm:$0xff]
    %v367 = vld [vmem:[#allocation10 + $0x60] sm:$0xff]
    %v368 = vld [vmem:[#allocation10 + $0x68] sm:$0xff]
    %v369 = vld [vmem:[#allocation10 + $0x70] sm:$0xff]
    %v370 = vld [vmem:[#allocation10 + $0x78] sm:$0xff]
    %v371 = vld [vmem:[%s6] sm:$0x1]
    %v373 = vlaneseq
    %v374 = vshrl.u32 %v373, 7
    %v375 = vsub.s32 0, %v374
    %v376 = vrot.slane %v371, %v375
    %378 = vmatprep.subr.mxu0 0.0
    %379 = vmatpush1.msra.mxu0 %v370
    %380 = vmatprep.subr.mxu0 0.0
    %381 = vmatpush1.msra.mxu0 %v369
    %382 = vmatprep.subr.mxu0 0.0
    %383 = vmatpush1.msra.mxu0 %v368
    %384 = vmatprep.subr.mxu0 0.0
    %385 = vmatpush1.msra.mxu0 %v367
    %386 = vmatprep.subr.mxu0 0.0
    %387 = vmatpush1.msra.mxu0 %v366
    %388 = vmatprep.subr.mxu0 0.0
    %389 = vmatpush1.msra.mxu0 %v365
    %390 = vmatprep.subr.mxu0 0.0
    %391 = vmatpush1.msra.mxu0 %v364
    %392 = vmatprep.subr.mxu0 0.0
    %393 = vmatpush1.msra.mxu0 %v363
    %394 = vmatprep.subr.mxu0 0.0
    %395 = vmatpush1.msra.mxu0 %v362
    %396 = vmatprep.subr.mxu0 0.0
    %397 = vmatpush1.msra.mxu0 %v361
    %398 = vmatprep.subr.mxu0 0.0
    %399 = vmatpush1.msra.mxu0 %v360
    %400 = vmatprep.subr.mxu0 0.0
    %401 = vmatpush1.msra.mxu0 %v359
    %402 = vmatprep.subr.mxu0 0.0
    %403 = vmatpush1.msra.mxu0 %v358
    %404 = vmatprep.subr.mxu0 0.0
    %405 = vmatpush1.msra.mxu0 %v357
    %406 = vmatprep.subr.mxu0 0.0
    %407 = vmatpush1.msra.mxu0 %v356
    %408 = vmatprep.subr.mxu0 0.0
    %409 = vmatpush1.msra.mxu0 %v355
    %410 = vmatprep.subr.mxu0 0.0
    %411 = vmatpush2.msra.mxu0 0.0
    %412 = vmatprep.subr.mxu0 0.0
    %413 = vmatpush2.msra.mxu0 0.0
    %414 = vmatprep.subr.mxu0 0.0
    %415 = vmatpush2.msra.mxu0 0.0
    %416 = vmatprep.subr.mxu0 0.0
    %417 = vmatpush2.msra.mxu0 0.0
    %418 = vmatprep.subr.mxu0 0.0
    %419 = vmatpush2.msra.mxu0 0.0
    %420 = vmatprep.subr.mxu0 0.0
    %421 = vmatpush2.msra.mxu0 0.0
    %422 = vmatprep.subr.mxu0 0.0
    %423 = vmatpush2.msra.mxu0 0.0
    %424 = vmatprep.subr.mxu0 0.0
    %425 = vmatpush2.msra.mxu0 0.0
    %426 = vmatprep.subr.mxu0 0.0
    %427 = vmatpush2.msra.mxu0 0.0
    %428 = vmatprep.subr.mxu0 0.0
    %429 = vmatpush2.msra.mxu0 0.0
    %430 = vmatprep.subr.mxu0 0.0
    %431 = vmatpush2.msra.mxu0 0.0
    %432 = vmatprep.subr.mxu0 0.0
    %433 = vmatpush2.msra.mxu0 0.0
    %434 = vmatprep.subr.mxu0 0.0
    %435 = vmatpush2.msra.mxu0 0.0
    %436 = vmatprep.subr.mxu0 0.0
    %437 = vmatpush2.msra.mxu0 0.0
    %438 = vmatprep.subr.mxu0 0.0
    %439 = vmatpush2.msra.mxu0 0.0
    %440 = vmatprep.subr.mxu0 0.0
    %441 = vmatpush2.msra.mxu0 0.0
    %442 = vmatprep.mubr.f32.mxu0 0.0
    %443 = vmatmul.mubr.f32.gmra.mxu0 %v353
    %v444 = vpop.f32.mrf.mxu0
    %v445 = vadd.f32 %v376, %v444
    %v446 = vpop.f32.mrf.mxu0
    %447 = vmatprep.mubr.f32.mxu0 0.0
    %448 = vmatmul.mubr.f32.gmra.mxu0 %v354
    %v449 = vpop.f32.mrf.mxu0
    %v450 = vadd.f32 %v376, %v449
    %v451 = vpop.f32.mrf.mxu0
    %452 = vdwg.mxu0
    %453 = vst [vmem:[#allocation11] sm:$0xff] %v445
    %454 = vst [vmem:[#allocation11 + $0x8] sm:$0xff] %v450
    // Predicated region
    $region50: #{tpu_custom_call.1} parent=1 // pred_check
      _
    $region51: #{tpu_custom_call.1} parent=1 // pred_check_branch
      %456 = sbr.rel (0) target = $region53
    $region52: #{tpu_custom_call.1} parent=1 // pred_region
      %s458 = ssub.s32 256, 256
      %459 = vsyncadd [#allocation4], %s458
      %s460 = sshll.u32 [#allocation11], 4
      %s461 = int_to_ptr.vmem [resolvable:$true] %s460
      %466 = dma.vmem_to_hbm [thread:$0]  %s461, 256, %s7, [#allocation4], 128, 128, 8
    $region53: #{tpu_custom_call.1} parent=1 // pred_fallthru
      _
    // Predicated region
    $region54: #{tpu_custom_call.1} parent=1 // pred_check
      _
    $region55: #{tpu_custom_call.1} parent=1 // pred_check_branch
      %468 = sbr.rel (0) target = $region57
    $region56: #{tpu_custom_call.1} parent=1 // pred_region
      %469 = dma.done [#allocation4], 256
    $region57: #{tpu_custom_call.1} parent=1 // pred_fallthru
      _
    %470 = vsyncpa [#allocation3], 1
    %471 = vsyncpa [#allocation6], 1
    %472 = vsyncpa [#allocation9], 1
    %473 = vsyncpa [#allocation4], 1

</llo_original>
